<compile_context>
chip_gen: v6e
topology: v6e:2x2x1
jax: 0.10.0
libtpu: 0.0.40
codegen_flags: <defaults>
</compile_context>

<pallas_src>
import functools

import jax
import jax.numpy as jnp
from jax import lax
from jax.experimental import pallas as pl
from jax.experimental.pallas import tpu as pltpu

LANE = 128
SUBLANE = 8


def _round_up(x, m):
    return ((x + m - 1) // m) * m


# ---------------------------------------------------------------------------
# Fused kernel: conv-as-matmul + hidden1 + n hidden layers + output, all tanh.
# ---------------------------------------------------------------------------
def _fused_mlp_kernel(x_ref, wc_ref, b_ref, w_ref, o_ref):
    """One batch tile of the whole network.

    x_ref : (bm, kp)      lane-dense, zero-padded flattened input
    wc_ref: (kp, p)       conv folded into a dense matrix (zero-padded)
    b_ref : (L+1, 1, p)   all biases, layer-major  (conv, hidden1, hidden..., res)
    w_ref : (L,   p, p)   all square weights       (hidden1, hidden..., res)
    o_ref : (bm, p)       padded output block (only HBM write)
    """
    f32 = jnp.float32
    # Conv layer (as MXU matmul); activation lives in vregs, never spilled to VMEM.
    h = jnp.tanh(jnp.dot(x_ref[...], wc_ref[...], preferred_element_type=f32)
                 + b_ref[0])
    # hidden1, the n hidden layers and the output layer share the same form.
    # L is tiny and static -> the Python loop unrolls (and handles n == 0).
    for i in range(w_ref.shape[0]):
        h = jnp.tanh(jnp.dot(h, w_ref[i], preferred_element_type=f32)
                     + b_ref[i + 1])
    o_ref[...] = h.astype(o_ref.dtype)


@functools.partial(jax.jit, static_argnames=("out_dim",))
def linear_conv_driver_forward(fused, x, *, out_dim):
    """x: (B, 16) float32 -> (B, out_dim) float32 via one fused Pallas call."""
    batch = x.shape[0]
    wc, b_all, w_all = fused["wc"], fused["b"], fused["w"]
    kp, p = wc.shape                     # padded K (128) and padded feature width
    L = w_all.shape[0]                   # number of square layers = n + 2

    # Batch tiling: one tile for small batches, 256-row tiles (parallel grid,
    # pipelined x/out DMAs, both v7x TensorCores) for large ones.
    bm = 256 if batch >= 256 else _round_up(batch, SUBLANE)
    b_pad = _round_up(batch, bm)
    x_p = jnp.pad(x, ((0, b_pad - batch), (0, kp - x.shape[1])))
    grid = (b_pad // bm,)

    flops = 2 * b_pad * (kp * p + L * p * p)
    transcendentals = b_pad * p * (L + 1)
    bytes_accessed = 4 * (b_pad * kp + kp * p + L * p * p + (L + 1) * p + b_pad * p)
    cost = pl.CostEstimate(flops=flops, transcendentals=transcendentals,
                           bytes_accessed=bytes_accessed)

    # Explicit VMEM budget for the resident-weights design (double-buffer headroom),
    # clamped to v7x's 64 MiB physical VMEM.
    weight_bytes = 4 * (kp * p + L * p * p + (L + 1) * p)
    act_bytes = 4 * bm * (kp + 2 * p)
    vmem_limit = int(min(max(2 * (weight_bytes + act_bytes) + (4 << 20), 32 << 20),
                         64 << 20))

    out_pad = pl.pallas_call(
        _fused_mlp_kernel,
        out_shape=jax.ShapeDtypeStruct((b_pad, p), jnp.float32),
        grid_spec=pltpu.PrefetchScalarGridSpec(
            num_scalar_prefetch=0,
            grid=grid,
            in_specs=[
                pl.BlockSpec((bm, kp), lambda i: (i, 0)),          # x: batch-tiled
                pl.BlockSpec((kp, p), lambda i: (0, 0)),           # conv-as-dense
                pl.BlockSpec((L + 1, 1, p), lambda i: (0, 0, 0)),  # all biases
                pl.BlockSpec((L, p, p), lambda i: (0, 0, 0)),      # all square weights
            ],
            out_specs=pl.BlockSpec((bm, p), lambda i: (i, 0)),
        ),
        compiler_params=pltpu.CompilerParams(
            dimension_semantics=("parallel",),
            vmem_limit_bytes=vmem_limit),
        cost_estimate=cost,
    )(x_p, wc, b_all, w_all)
    return out_pad[:batch, :out_dim]


# ---------------------------------------------------------------------------
# Parameter construction / one-time fusion & padding.
# ---------------------------------------------------------------------------
def _init_linear(key, in_dim, out_dim):
    kw, kb = jax.random.split(key)
    bound = in_dim ** -0.5
    w = jax.random.uniform(kw, (in_dim, out_dim), jnp.float32, -bound, bound)
    b = jax.random.uniform(kb, (out_dim,), jnp.float32, -bound, bound)
    return {"w": w, "b": b}


def _init_conv(key, out_ch, kh):
    kw, kb = jax.random.split(key)
    bound = kh ** -0.5              # fan_in = 1 * kh * 1
    w = jax.random.uniform(kw, (out_ch, 1, kh, 1), jnp.float32, -bound, bound)
    b = jax.random.uniform(kb, (out_ch,), jnp.float32, -bound, bound)
    return {"w": w, "b": b}


def make_params(key, conv_number, number_of_drivers, input_size, hidden_size,
                n, output_dim):
    keys = jax.random.split(key, n + 3)
    return {
        "conv": _init_conv(keys[0], conv_number, number_of_drivers),
        "hidden1": _init_linear(keys[1], conv_number * input_size, hidden_size),
        "hidden": [_init_linear(keys[2 + i], hidden_size, hidden_size)
                   for i in range(n)],
        "res": _init_linear(keys[n + 2], hidden_size, output_dim),
    }


def conv_as_dense(w, b, h_in=4, w_in=4):
    """Fold Conv2d(1, C, (kh, 1), valid) into an equivalent dense matrix + bias
    acting on the row-major flattened (h_in*w_in,) input, matching PyTorch's
    NCHW flatten order of the conv output (the forward hard-codes h_in=w_in=4)."""
    c, in_ch, kh, kw = w.shape
    assert in_ch == 1 and kw == 1, "module spec: Conv2d(1, C, (kh, 1))"
    h_out = h_in - kh + 1
    assert h_out >= 1, "conv kernel height exceeds the hard-coded 4-row view"
    w2 = w[:, 0, :, 0]                                         # (C, kh)
    rr = jnp.arange(h_in)[None, None, :]
    ii = jnp.arange(h_out)[None, :, None]
    dd = jnp.arange(kh)[:, None, None]
    onehot = (rr == ii + dd).astype(jnp.float32)               # (kh, h_out, h_in)
    kmat = jnp.einsum("ck,kir->cir", w2, onehot)               # (C, h_out, h_in)
    eye = jnp.eye(w_in, dtype=jnp.float32)
    dense = jnp.einsum("cir,vw->rvciw", kmat, eye)             # (h_in,w_in,C,h_out,w_in)
    dense = dense.reshape(h_in * w_in, c * h_out * w_in)
    bias = jnp.broadcast_to(b[:, None, None], (c, h_out, w_in)).reshape(-1)
    return dense, bias


def fuse_and_pad_params(params, lane=LANE):
    """One-time prep: fold conv into a matmul, zero-pad feature dims to a lane
    multiple, pad K to 128, and stack all square weights/biases into single arrays."""
    wc_d, bc_d = conv_as_dense(params["conv"]["w"], params["conv"]["b"])
    f1 = wc_d.shape[1]
    assert params["hidden1"]["w"].shape[0] == f1, (
        "conv_number * input_size must equal the conv's flattened output width "
        f"({params['hidden1']['w'].shape[0]} vs {f1}); the module's forward "
        "hard-codes a (B, 1, 4, 4) view of the input")
    hid = params["hidden1"]["w"].shape[1]
    out = params["res"]["w"].shape[1]
    p = _round_up(max(f1, hid, out), lane)
    kp = _round_up(wc_d.shape[0], lane)          # lane-dense K (16 -> 128)

    def pad_w(w):
        return jnp.pad(w, ((0, p - w.shape[0]), (0, p - w.shape[1])))

    def pad_b(b):
        b = jnp.asarray(b).reshape(1, -1)
        return jnp.pad(b, ((0, 0), (0, p - b.shape[1])))

    square = [params["hidden1"]] + list(params["hidden"]) + [params["res"]]
    w_all = jnp.stack([pad_w(l["w"]) for l in square])                   # (L, p, p)
    b_all = jnp.stack([pad_b(bc_d)] + [pad_b(l["b"]) for l in square])   # (L+1, 1, p)
    wc = jnp.pad(wc_d, ((0, kp - wc_d.shape[0]), (0, p - f1)))           # (kp, p)
    return {"wc": wc, "b": b_all, "w": w_all}


# ---------------------------------------------------------------------------
# Pure-JAX reference (matches the PyTorch module semantics).
# ---------------------------------------------------------------------------
def _reference_forward(params, x):
    hp = lax.Precision.HIGHEST
    b = x.shape[0]
    xi = x.reshape(b, 1, 4, 4)
    y = lax.conv_general_dilated(
        xi, params["conv"]["w"], window_strides=(1, 1), padding="VALID",
        dimension_numbers=("NCHW", "OIHW", "NCHW"), precision=hp)
    y = jnp.tanh(y + params["conv"]["b"][None, :, None, None])
    h = y.reshape(b, -1)
    h = jnp.tanh(jnp.dot(h, params["hidden1"]["w"], precision=hp)
                 + params["hidden1"]["b"])
    for layer in params["hidden"]:
        h = jnp.tanh(jnp.dot(h, layer["w"], precision=hp) + layer["b"])
    return jnp.tanh(jnp.dot(h, params["res"]["w"], precision=hp)
                    + params["res"]["b"])


if __name__ == "__main__":
    # Module hyper-params (forward hard-codes a (B, 1, 4, 4) view of the input).
    conv_number = 4                                  # conv output channels
    number_of_drivers = 4                            # conv kernel height -> h_out = 1
    input_size = (4 - number_of_drivers + 1) * 4     # = 4  -> hidden1 in = 16
    hidden_size = 32
    n_layers = 2
    output_dim = 4
    batch = 8

    key = jax.random.PRNGKey(0)
    k_params, k_x = jax.random.split(key)
    params = make_params(k_params, conv_number, number_of_drivers, input_size,
                         hidden_size, n_layers, output_dim)
    x = jax.random.normal(k_x, (batch, 16), dtype=jnp.float32)

    fused = fuse_and_pad_params(params)              # one-time prep (outside jit)
    out = linear_conv_driver_forward(fused, x, out_dim=output_dim)
    out = jax.block_until_ready(out)

    ref = _reference_forward(params, x)
    assert out.shape == (batch, output_dim)
    assert jnp.allclose(out, ref, atol=1e-5, rtol=1e-5), (
        float(jnp.max(jnp.abs(out - ref))))

    print("KERNEL_OK")
</pallas_src>

<mosaic_0001>
module attributes {stable_mosaic.version = 11 : i64} {
  func.func @_fused_mlp_kernel(%arg0: i32, %arg1: memref<8x128xf32, #tpu.memory_space<vmem>>, %arg2: memref<128x128xf32, #tpu.memory_space<vmem>>, %arg3: memref<5x1x128xf32, #tpu.memory_space<vmem>>, %arg4: memref<4x128x128xf32, #tpu.memory_space<vmem>>, %arg5: memref<8x128xf32, #tpu.memory_space<vmem>>) attributes {dimension_semantics = [#tpu.dimension_semantics<parallel>], iteration_bounds = array<i64: 1>, scalar_prefetch = 0 : i64, scratch_operands = 0 : i64, tpu.core_type = #tpu.core_type<tc>, window_params = [{transform_indices = @transform_0, window_bounds = array<i64: 8, 128>}, {pipeline_mode = #tpu.pipeline_mode<synchronous>, transform_indices = @transform_1, window_bounds = array<i64: 128, 128>}, {pipeline_mode = #tpu.pipeline_mode<synchronous>, transform_indices = @transform_2, window_bounds = array<i64: 5, 1, 128>}, {pipeline_mode = #tpu.pipeline_mode<synchronous>, transform_indices = @transform_3, window_bounds = array<i64: 4, 128, 128>}, {transform_indices = @transform_4, window_bounds = array<i64: 8, 128>}]} {
    %c0 = arith.constant 0 : index
    %c0_0 = arith.constant 0 : index
    %0 = vector.load %arg1[%c0, %c0_0] : memref<8x128xf32, #tpu.memory_space<vmem>>, vector<8x128xf32>
    %c0_1 = arith.constant 0 : index
    %c0_2 = arith.constant 0 : index
    %1 = vector.load %arg2[%c0_1, %c0_2] : memref<128x128xf32, #tpu.memory_space<vmem>>, vector<128x128xf32>
    %cst = arith.constant dense<0.000000e+00> : vector<8x128xf32>
    %2 = tpu.matmul %0, %1, %cst {dimension_numbers = #tpu.dot_dimension_numbers<[1], [0], [0], [1], [0, 0, 1, 1], [], []>} : vector<8x128xf32>, vector<128x128xf32>, vector<8x128xf32> -> vector<8x128xf32>
    %c0_3 = arith.constant 0 : index
    %c0_4 = arith.constant 0 : index
    %c0_5 = arith.constant 0 : index
    %3 = vector.load %arg3[%c0_3, %c0_4, %c0_5] : memref<5x1x128xf32, #tpu.memory_space<vmem>>, vector<1x1x128xf32>
    %4 = vector.shape_cast %3 : vector<1x1x128xf32> to vector<1x128xf32>
    %5 = vector.broadcast %4 : vector<1x128xf32> to vector<8x128xf32>
    %6 = arith.addf %2, %5 : vector<8x128xf32>
    %7 = math.tanh %6 : vector<8x128xf32>
    %c0_6 = arith.constant 0 : index
    %c0_7 = arith.constant 0 : index
    %c0_8 = arith.constant 0 : index
    %8 = vector.load %arg4[%c0_6, %c0_7, %c0_8] : memref<4x128x128xf32, #tpu.memory_space<vmem>>, vector<1x128x128xf32>
    %9 = vector.shape_cast %8 : vector<1x128x128xf32> to vector<128x128xf32>
    %cst_9 = arith.constant dense<0.000000e+00> : vector<8x128xf32>
    %10 = tpu.matmul %7, %9, %cst_9 {dimension_numbers = #tpu.dot_dimension_numbers<[1], [0], [0], [1], [0, 0, 1, 1], [], []>} : vector<8x128xf32>, vector<128x128xf32>, vector<8x128xf32> -> vector<8x128xf32>
    %c1 = arith.constant 1 : index
    %c0_10 = arith.constant 0 : index
    %c0_11 = arith.constant 0 : index
    %11 = vector.load %arg3[%c1, %c0_10, %c0_11] : memref<5x1x128xf32, #tpu.memory_space<vmem>>, vector<1x1x128xf32>
    %12 = vector.shape_cast %11 : vector<1x1x128xf32> to vector<1x128xf32>
    %13 = vector.broadcast %12 : vector<1x128xf32> to vector<8x128xf32>
    %14 = arith.addf %10, %13 : vector<8x128xf32>
    %15 = math.tanh %14 : vector<8x128xf32>
    %c1_12 = arith.constant 1 : index
    %c0_13 = arith.constant 0 : index
    %c0_14 = arith.constant 0 : index
    %16 = vector.load %arg4[%c1_12, %c0_13, %c0_14] : memref<4x128x128xf32, #tpu.memory_space<vmem>>, vector<1x128x128xf32>
    %17 = vector.shape_cast %16 : vector<1x128x128xf32> to vector<128x128xf32>
    %cst_15 = arith.constant dense<0.000000e+00> : vector<8x128xf32>
    %18 = tpu.matmul %15, %17, %cst_15 {dimension_numbers = #tpu.dot_dimension_numbers<[1], [0], [0], [1], [0, 0, 1, 1], [], []>} : vector<8x128xf32>, vector<128x128xf32>, vector<8x128xf32> -> vector<8x128xf32>
    %c2 = arith.constant 2 : index
    %c0_16 = arith.constant 0 : index
    %c0_17 = arith.constant 0 : index
    %19 = vector.load %arg3[%c2, %c0_16, %c0_17] : memref<5x1x128xf32, #tpu.memory_space<vmem>>, vector<1x1x128xf32>
    %20 = vector.shape_cast %19 : vector<1x1x128xf32> to vector<1x128xf32>
    %21 = vector.broadcast %20 : vector<1x128xf32> to vector<8x128xf32>
    %22 = arith.addf %18, %21 : vector<8x128xf32>
    %23 = math.tanh %22 : vector<8x128xf32>
    %c2_18 = arith.constant 2 : index
    %c0_19 = arith.constant 0 : index
    %c0_20 = arith.constant 0 : index
    %24 = vector.load %arg4[%c2_18, %c0_19, %c0_20] : memref<4x128x128xf32, #tpu.memory_space<vmem>>, vector<1x128x128xf32>
    %25 = vector.shape_cast %24 : vector<1x128x128xf32> to vector<128x128xf32>
    %cst_21 = arith.constant dense<0.000000e+00> : vector<8x128xf32>
    %26 = tpu.matmul %23, %25, %cst_21 {dimension_numbers = #tpu.dot_dimension_numbers<[1], [0], [0], [1], [0, 0, 1, 1], [], []>} : vector<8x128xf32>, vector<128x128xf32>, vector<8x128xf32> -> vector<8x128xf32>
    %c3 = arith.constant 3 : index
    %c0_22 = arith.constant 0 : index
    %c0_23 = arith.constant 0 : index
    %27 = vector.load %arg3[%c3, %c0_22, %c0_23] : memref<5x1x128xf32, #tpu.memory_space<vmem>>, vector<1x1x128xf32>
    %28 = vector.shape_cast %27 : vector<1x1x128xf32> to vector<1x128xf32>
    %29 = vector.broadcast %28 : vector<1x128xf32> to vector<8x128xf32>
    %30 = arith.addf %26, %29 : vector<8x128xf32>
    %31 = math.tanh %30 : vector<8x128xf32>
    %c3_24 = arith.constant 3 : index
    %c0_25 = arith.constant 0 : index
    %c0_26 = arith.constant 0 : index
    %32 = vector.load %arg4[%c3_24, %c0_25, %c0_26] : memref<4x128x128xf32, #tpu.memory_space<vmem>>, vector<1x128x128xf32>
    %33 = vector.shape_cast %32 : vector<1x128x128xf32> to vector<128x128xf32>
    %cst_27 = arith.constant dense<0.000000e+00> : vector<8x128xf32>
    %34 = tpu.matmul %31, %33, %cst_27 {dimension_numbers = #tpu.dot_dimension_numbers<[1], [0], [0], [1], [0, 0, 1, 1], [], []>} : vector<8x128xf32>, vector<128x128xf32>, vector<8x128xf32> -> vector<8x128xf32>
    %c4 = arith.constant 4 : index
    %c0_28 = arith.constant 0 : index
    %c0_29 = arith.constant 0 : index
    %35 = vector.load %arg3[%c4, %c0_28, %c0_29] : memref<5x1x128xf32, #tpu.memory_space<vmem>>, vector<1x1x128xf32>
    %36 = vector.shape_cast %35 : vector<1x1x128xf32> to vector<1x128xf32>
    %37 = vector.broadcast %36 : vector<1x128xf32> to vector<8x128xf32>
    %38 = arith.addf %34, %37 : vector<8x128xf32>
    %39 = math.tanh %38 : vector<8x128xf32>
    %c0_30 = arith.constant 0 : index
    %c0_31 = arith.constant 0 : index
    %40 = vector.load %arg5[%c0_30, %c0_31] : memref<8x128xf32, #tpu.memory_space<vmem>>, vector<8x128xf32>
    tpu.vector_store %arg5[%c0_30, %c0_31], %39 {strides = array<i32>} : memref<8x128xf32, #tpu.memory_space<vmem>>, vector<8x128xf32>,
    return
  }
  func.func @transform_0(%arg0: i32) -> (i32, i32) {
    %c0_i32 = arith.constant 0 : i32
    %c0_i32_0 = arith.constant 0 : i32
    return %arg0, %c0_i32 : i32, i32
  }
  func.func @transform_1(%arg0: i32) -> (i32, i32) {
    %c0_i32 = arith.constant 0 : i32
    %c0_i32_0 = arith.constant 0 : i32
    %c0_i32_1 = arith.constant 0 : i32
    return %c0_i32, %c0_i32_0 : i32, i32
  }
  func.func @transform_2(%arg0: i32) -> (i32, i32, i32) {
    %c0_i32 = arith.constant 0 : i32
    %c0_i32_0 = arith.constant 0 : i32
    %c0_i32_1 = arith.constant 0 : i32
    %c0_i32_2 = arith.constant 0 : i32
    return %c0_i32, %c0_i32_0, %c0_i32_1 : i32, i32, i32
  }
  func.func @transform_3(%arg0: i32) -> (i32, i32, i32) {
    %c0_i32 = arith.constant 0 : i32
    %c0_i32_0 = arith.constant 0 : i32
    %c0_i32_1 = arith.constant 0 : i32
    %c0_i32_2 = arith.constant 0 : i32
    return %c0_i32, %c0_i32_0, %c0_i32_1 : i32, i32, i32
  }
  func.func @transform_4(%arg0: i32) -> (i32, i32) {
    %c0_i32 = arith.constant 0 : i32
    %c0_i32_0 = arith.constant 0 : i32
    return %arg0, %c0_i32 : i32, i32
  }
}

</mosaic_0001>

<llo_original>
// kernel: linear_conv_driver_forward.1
$region0: #{linear_conv_driver_forward.1}
  #allocation0 [shape = 'u32[]', space=smem, size = 0x4, offset = 0x4, fixed_abs, tag = 'smem constant byte address 0x4 - core index']
  #allocation1 [shape = 'u32[144,128]{1,0:T(1,128)}', space=vmem, size = 0x12000, scoped, tag = 'internal scratch']
  %s0 = inlined_call_operand.vmem [shape: f32[8,128], index: 0, kind: input, shape index: {}]
  %s1 = inlined_call_operand.hbm [shape: f32[128,128], index: 1, kind: input, shape index: {}]
  %s2 = inlined_call_operand.vmem [shape: f32[5,1,128], index: 2, kind: input, shape index: {}]
  %s3 = inlined_call_operand.hbm [shape: f32[4,128,128], index: 3, kind: input, shape index: {}]
  %s4 = inlined_call_operand.vmem [shape: f32[8,128], index: 4, kind: output, shape index: {}]
  %s5 = sld [smem:[#allocation0]]
  $region34: #{linear_conv_driver_forward.1} parent=0
    _
  %s7 = ssub.s32 1, %s5
  %s8 = scalar_select 0, %s7, %s5
  $region1: #{linear_conv_driver_forward.1} parent=0
    #allocation2 [shape = 'u8[65536]{0}', space=vmem, size = 0x10000, scoped, tag = 'input window, operand 1, single buffered']
    #allocation3 [shape = 's32[1]{0}', space=sflag, size = 0x4, scoped, tag = 'scoped memory for linear_conv_driver_forward.1']
    #allocation4 [shape = 'u8[262144]{0}', space=vmem, size = 0x40000, scoped, tag = 'input window, operand 3, single buffered']
    #allocation5 [shape = 's32[1]{0}', space=sflag, size = 0x4, scoped, tag = 'scoped memory for linear_conv_driver_forward.1']
    %9 = vsyncpa [#allocation3], 0
    %10 = vsyncpa [#allocation5], 0
    // Predicated region
    $region2: #{linear_conv_driver_forward.1} parent=1 // pred_check
      _
    $region3: #{linear_conv_driver_forward.1} parent=1 // pred_check_branch
      %12 = sbr.rel (0) target = $region5
    $region4: #{linear_conv_driver_forward.1} parent=1 // pred_region
      _
    $region5: #{linear_conv_driver_forward.1} parent=1 // pred_fallthru
      _
    // Predicated region
    $region6: #{linear_conv_driver_forward.1} parent=1 // pred_check
      _
    $region7: #{linear_conv_driver_forward.1} parent=1 // pred_check_branch
      %14 = sbr.rel (0) target = $region9
    $region8: #{linear_conv_driver_forward.1} parent=1 // pred_region
      %s16 = ssub.s32 2048, 2048
      %17 = vsyncadd [#allocation3], %s16
      %s18 = sshll.u32 [#allocation2], 4
      %s19 = int_to_ptr.vmem [resolvable:$true] %s18
      %24 = dma.hbm_to_vmem [thread:$0]  %s1, 2048, %s19, [#allocation3], 128, 128, 8
    $region9: #{linear_conv_driver_forward.1} parent=1 // pred_fallthru
      _
    // Predicated region
    $region10: #{linear_conv_driver_forward.1} parent=1 // pred_check
      _
    $region11: #{linear_conv_driver_forward.1} parent=1 // pred_check_branch
      %26 = sbr.rel (0) target = $region13
    $region12: #{linear_conv_driver_forward.1} parent=1 // pred_region
      _
    $region13: #{linear_conv_driver_forward.1} parent=1 // pred_fallthru
      _
    // Predicated region
    $region14: #{linear_conv_driver_forward.1} parent=1 // pred_check
      _
    $region15: #{linear_conv_driver_forward.1} parent=1 // pred_check_branch
      %28 = sbr.rel (0) target = $region17
    $region16: #{linear_conv_driver_forward.1} parent=1 // pred_region
      %s30 = ssub.s32 8192, 8192
      %31 = vsyncadd [#allocation5], %s30
      %s32 = sshll.u32 [#allocation4], 4
      %s33 = int_to_ptr.vmem [resolvable:$true] %s32
      %38 = dma.hbm_to_vmem [thread:$0]  %s3, 8192, %s33, [#allocation5], 128, 128, 8
    $region17: #{linear_conv_driver_forward.1} parent=1 // pred_fallthru
      _
    // Predicated region
    $region18: #{linear_conv_driver_forward.1} parent=1 // pred_check
      _
    $region19: #{linear_conv_driver_forward.1} parent=1 // pred_check_branch
      %40 = sbr.rel (0) target = $region21
    $region20: #{linear_conv_driver_forward.1} parent=1 // pred_region
      %41 = dma.done [#allocation3], 2048
    $region21: #{linear_conv_driver_forward.1} parent=1 // pred_fallthru
      _
    // Predicated region
    $region22: #{linear_conv_driver_forward.1} parent=1 // pred_check
      _
    $region23: #{linear_conv_driver_forward.1} parent=1 // pred_check_branch
      %43 = sbr.rel (0) target = $region25
    $region24: #{linear_conv_driver_forward.1} parent=1 // pred_region
      %44 = dma.done [#allocation5], 8192
    $region25: #{linear_conv_driver_forward.1} parent=1 // pred_fallthru
      _
    %v45 = vld [vmem:[%s0] sm:$0xff]
    %v46 = vld [vmem:[#allocation2] sm:$0xff]
    %v47 = vld [vmem:[#allocation2 + $0x8] sm:$0xff]
    %v48 = vld [vmem:[#allocation2 + $0x10] sm:$0xff]
    %v49 = vld [vmem:[#allocation2 + $0x18] sm:$0xff]
    %v50 = vld [vmem:[#allocation2 + $0x20] sm:$0xff]
    %v51 = vld [vmem:[#allocation2 + $0x28] sm:$0xff]
    %v52 = vld [vmem:[#allocation2 + $0x30] sm:$0xff]
    %v53 = vld [vmem:[#allocation2 + $0x38] sm:$0xff]
    %v54 = vld [vmem:[#allocation2 + $0x40] sm:$0xff]
    %v55 = vld [vmem:[#allocation2 + $0x48] sm:$0xff]
    %v56 = vld [vmem:[#allocation2 + $0x50] sm:$0xff]
    %v57 = vld [vmem:[#allocation2 + $0x58] sm:$0xff]
    %v58 = vld [vmem:[#allocation2 + $0x60] sm:$0xff]
    %v59 = vld [vmem:[#allocation2 + $0x68] sm:$0xff]
    %v60 = vld [vmem:[#allocation2 + $0x70] sm:$0xff]
    %v61 = vld [vmem:[#allocation2 + $0x78] sm:$0xff]
    %v62 = vld [vmem:[%s2] sm:$0x1]
    %v64 = vlaneseq
    %v65 = vshrl.u32 %v64, 7
    %v66 = vsub.s32 0, %v65
    %v67 = vrot.slane %v62, %v66
    %69 = vmatprep.subr.mxu0 0.0
    %70 = vmatpush1.msra.mxu0 %v61
    %71 = vmatprep.subr.mxu0 0.0
    %72 = vmatpush1.msra.mxu0 %v60
    %73 = vmatprep.subr.mxu0 0.0
    %74 = vmatpush1.msra.mxu0 %v59
    %75 = vmatprep.subr.mxu0 0.0
    %76 = vmatpush1.msra.mxu0 %v58
    %77 = vmatprep.subr.mxu0 0.0
    %78 = vmatpush1.msra.mxu0 %v57
    %79 = vmatprep.subr.mxu0 0.0
    %80 = vmatpush1.msra.mxu0 %v56
    %81 = vmatprep.subr.mxu0 0.0
    %82 = vmatpush1.msra.mxu0 %v55
    %83 = vmatprep.subr.mxu0 0.0
    %84 = vmatpush1.msra.mxu0 %v54
    %85 = vmatprep.subr.mxu0 0.0
    %86 = vmatpush1.msra.mxu0 %v53
    %87 = vmatprep.subr.mxu0 0.0
    %88 = vmatpush1.msra.mxu0 %v52
    %89 = vmatprep.subr.mxu0 0.0
    %90 = vmatpush1.msra.mxu0 %v51
    %91 = vmatprep.subr.mxu0 0.0
    %92 = vmatpush1.msra.mxu0 %v50
    %93 = vmatprep.subr.mxu0 0.0
    %94 = vmatpush1.msra.mxu0 %v49
    %95 = vmatprep.subr.mxu0 0.0
    %96 = vmatpush1.msra.mxu0 %v48
    %97 = vmatprep.subr.mxu0 0.0
    %98 = vmatpush1.msra.mxu0 %v47
    %99 = vmatprep.subr.mxu0 0.0
    %100 = vmatpush1.msra.mxu0 %v46
    %101 = vmatprep.subr.mxu0 0.0
    %102 = vmatpush2.msra.mxu0 0.0
    %103 = vmatprep.subr.mxu0 0.0
    %104 = vmatpush2.msra.mxu0 0.0
    %105 = vmatprep.subr.mxu0 0.0
    %106 = vmatpush2.msra.mxu0 0.0
    %107 = vmatprep.subr.mxu0 0.0
    %108 = vmatpush2.msra.mxu0 0.0
    %109 = vmatprep.subr.mxu0 0.0
    %110 = vmatpush2.msra.mxu0 0.0
    %111 = vmatprep.subr.mxu0 0.0
    %112 = vmatpush2.msra.mxu0 0.0
    %113 = vmatprep.subr.mxu0 0.0
    %114 = vmatpush2.msra.mxu0 0.0
    %115 = vmatprep.subr.mxu0 0.0
    %116 = vmatpush2.msra.mxu0 0.0
    %117 = vmatprep.subr.mxu0 0.0
    %118 = vmatpush2.msra.mxu0 0.0
    %119 = vmatprep.subr.mxu0 0.0
    %120 = vmatpush2.msra.mxu0 0.0
    %121 = vmatprep.subr.mxu0 0.0
    %122 = vmatpush2.msra.mxu0 0.0
    %123 = vmatprep.subr.mxu0 0.0
    %124 = vmatpush2.msra.mxu0 0.0
    %125 = vmatprep.subr.mxu0 0.0
    %126 = vmatpush2.msra.mxu0 0.0
    %127 = vmatprep.subr.mxu0 0.0
    %128 = vmatpush2.msra.mxu0 0.0
    %129 = vmatprep.subr.mxu0 0.0
    %130 = vmatpush2.msra.mxu0 0.0
    %131 = vmatprep.subr.mxu0 0.0
    %132 = vmatpush2.msra.mxu0 0.0
    %133 = vmatprep.mubr.f32.mxu0 0.0
    %134 = vmatmul.mubr.f32.gmra.mxu0 %v45
    %v135 = vpop.f32.mrf.mxu0
    %v136 = vadd.f32 %v67, %v135
    %v137 = vpop.f32.mrf.mxu0
    %138 = vdwg.mxu0
    %v139 = vtanh.pop %v136
    %v140 = vld [vmem:[#allocation4] sm:$0xff]
    %v141 = vld [vmem:[#allocation4 + $0x8] sm:$0xff]
    %v142 = vld [vmem:[#allocation4 + $0x10] sm:$0xff]
    %v143 = vld [vmem:[#allocation4 + $0x18] sm:$0xff]
    %v144 = vld [vmem:[#allocation4 + $0x20] sm:$0xff]
    %v145 = vld [vmem:[#allocation4 + $0x28] sm:$0xff]
    %v146 = vld [vmem:[#allocation4 + $0x30] sm:$0xff]
    %v147 = vld [vmem:[#allocation4 + $0x38] sm:$0xff]
    %v148 = vld [vmem:[#allocation4 + $0x40] sm:$0xff]
    %v149 = vld [vmem:[#allocation4 + $0x48] sm:$0xff]
    %v150 = vld [vmem:[#allocation4 + $0x50] sm:$0xff]
    %v151 = vld [vmem:[#allocation4 + $0x58] sm:$0xff]
    %v152 = vld [vmem:[#allocation4 + $0x60] sm:$0xff]
    %v153 = vld [vmem:[#allocation4 + $0x68] sm:$0xff]
    %v154 = vld [vmem:[#allocation4 + $0x70] sm:$0xff]
    %v155 = vld [vmem:[#allocation4 + $0x78] sm:$0xff]
    %s156 = scalar_lea.vmem %s2, 1
    %v157 = vld [vmem:[%s156] sm:$0x1]
    %v159 = vlaneseq
    %v160 = vshrl.u32 %v159, 7
    %v161 = vsub.s32 0, %v160
    %v162 = vrot.slane %v157, %v161
    %164 = vmatprep.subr.mxu0 0.0
    %165 = vmatpush1.msra.mxu0 %v155
    %166 = vmatprep.subr.mxu0 0.0
    %167 = vmatpush1.msra.mxu0 %v154
    %168 = vmatprep.subr.mxu0 0.0
    %169 = vmatpush1.msra.mxu0 %v153
    %170 = vmatprep.subr.mxu0 0.0
    %171 = vmatpush1.msra.mxu0 %v152
    %172 = vmatprep.subr.mxu0 0.0
    %173 = vmatpush1.msra.mxu0 %v151
    %174 = vmatprep.subr.mxu0 0.0
    %175 = vmatpush1.msra.mxu0 %v150
    %176 = vmatprep.subr.mxu0 0.0
    %177 = vmatpush1.msra.mxu0 %v149
    %178 = vmatprep.subr.mxu0 0.0
    %179 = vmatpush1.msra.mxu0 %v148
    %180 = vmatprep.subr.mxu0 0.0
    %181 = vmatpush1.msra.mxu0 %v147
    %182 = vmatprep.subr.mxu0 0.0
    %183 = vmatpush1.msra.mxu0 %v146
    %184 = vmatprep.subr.mxu0 0.0
    %185 = vmatpush1.msra.mxu0 %v145
    %186 = vmatprep.subr.mxu0 0.0
    %187 = vmatpush1.msra.mxu0 %v144
    %188 = vmatprep.subr.mxu0 0.0
    %189 = vmatpush1.msra.mxu0 %v143
    %190 = vmatprep.subr.mxu0 0.0
    %191 = vmatpush1.msra.mxu0 %v142
    %192 = vmatprep.subr.mxu0 0.0
    %193 = vmatpush1.msra.mxu0 %v141
    %194 = vmatprep.subr.mxu0 0.0
    %195 = vmatpush1.msra.mxu0 %v140
    %196 = vmatprep.subr.mxu0 0.0
    %197 = vmatpush2.msra.mxu0 0.0
    %198 = vmatprep.subr.mxu0 0.0
    %199 = vmatpush2.msra.mxu0 0.0
    %200 = vmatprep.subr.mxu0 0.0
    %201 = vmatpush2.msra.mxu0 0.0
    %202 = vmatprep.subr.mxu0 0.0
    %203 = vmatpush2.msra.mxu0 0.0
    %204 = vmatprep.subr.mxu0 0.0
    %205 = vmatpush2.msra.mxu0 0.0
    %206 = vmatprep.subr.mxu0 0.0
    %207 = vmatpush2.msra.mxu0 0.0
    %208 = vmatprep.subr.mxu0 0.0
    %209 = vmatpush2.msra.mxu0 0.0
    %210 = vmatprep.subr.mxu0 0.0
    %211 = vmatpush2.msra.mxu0 0.0
    %212 = vmatprep.subr.mxu0 0.0
    %213 = vmatpush2.msra.mxu0 0.0
    %214 = vmatprep.subr.mxu0 0.0
    %215 = vmatpush2.msra.mxu0 0.0
    %216 = vmatprep.subr.mxu0 0.0
    %217 = vmatpush2.msra.mxu0 0.0
    %218 = vmatprep.subr.mxu0 0.0
    %219 = vmatpush2.msra.mxu0 0.0
    %220 = vmatprep.subr.mxu0 0.0
    %221 = vmatpush2.msra.mxu0 0.0
    %222 = vmatprep.subr.mxu0 0.0
    %223 = vmatpush2.msra.mxu0 0.0
    %224 = vmatprep.subr.mxu0 0.0
    %225 = vmatpush2.msra.mxu0 0.0
    %226 = vmatprep.subr.mxu0 0.0
    %227 = vmatpush2.msra.mxu0 0.0
    %228 = vmatprep.mubr.f32.mxu0 0.0
    %229 = vmatmul.mubr.f32.gmra.mxu0 %v139
    %v230 = vpop.f32.mrf.mxu0
    %v231 = vadd.f32 %v162, %v230
    %v232 = vpop.f32.mrf.mxu0
    %233 = vdwg.mxu0
    %v234 = vtanh.pop %v231
    %s235 = scalar_lea.vmem [#allocation4], 128
    %v236 = vld [vmem:[%s235] sm:$0xff]
    %v237 = vld [vmem:[%s235 + $0x8] sm:$0xff]
    %v238 = vld [vmem:[%s235 + $0x10] sm:$0xff]
    %v239 = vld [vmem:[%s235 + $0x18] sm:$0xff]
    %v240 = vld [vmem:[%s235 + $0x20] sm:$0xff]
    %v241 = vld [vmem:[%s235 + $0x28] sm:$0xff]
    %v242 = vld [vmem:[%s235 + $0x30] sm:$0xff]
    %v243 = vld [vmem:[%s235 + $0x38] sm:$0xff]
    %v244 = vld [vmem:[%s235 + $0x40] sm:$0xff]
    %v245 = vld [vmem:[%s235 + $0x48] sm:$0xff]
    %v246 = vld [vmem:[%s235 + $0x50] sm:$0xff]
    %v247 = vld [vmem:[%s235 + $0x58] sm:$0xff]
    %v248 = vld [vmem:[%s235 + $0x60] sm:$0xff]
    %v249 = vld [vmem:[%s235 + $0x68] sm:$0xff]
    %v250 = vld [vmem:[%s235 + $0x70] sm:$0xff]
    %v251 = vld [vmem:[%s235 + $0x78] sm:$0xff]
    %s252 = scalar_lea.vmem %s2, 2
    %v253 = vld [vmem:[%s252] sm:$0x1]
    %v255 = vlaneseq
    %v256 = vshrl.u32 %v255, 7
    %v257 = vsub.s32 0, %v256
    %v258 = vrot.slane %v253, %v257
    %260 = vmatprep.subr.mxu0 0.0
    %261 = vmatpush1.msra.mxu0 %v251
    %262 = vmatprep.subr.mxu0 0.0
    %263 = vmatpush1.msra.mxu0 %v250
    %264 = vmatprep.subr.mxu0 0.0
    %265 = vmatpush1.msra.mxu0 %v249
    %266 = vmatprep.subr.mxu0 0.0
    %267 = vmatpush1.msra.mxu0 %v248
    %268 = vmatprep.subr.mxu0 0.0
    %269 = vmatpush1.msra.mxu0 %v247
    %270 = vmatprep.subr.mxu0 0.0
    %271 = vmatpush1.msra.mxu0 %v246
    %272 = vmatprep.subr.mxu0 0.0
    %273 = vmatpush1.msra.mxu0 %v245
    %274 = vmatprep.subr.mxu0 0.0
    %275 = vmatpush1.msra.mxu0 %v244
    %276 = vmatprep.subr.mxu0 0.0
    %277 = vmatpush1.msra.mxu0 %v243
    %278 = vmatprep.subr.mxu0 0.0
    %279 = vmatpush1.msra.mxu0 %v242
    %280 = vmatprep.subr.mxu0 0.0
    %281 = vmatpush1.msra.mxu0 %v241
    %282 = vmatprep.subr.mxu0 0.0
    %283 = vmatpush1.msra.mxu0 %v240
    %284 = vmatprep.subr.mxu0 0.0
    %285 = vmatpush1.msra.mxu0 %v239
    %286 = vmatprep.subr.mxu0 0.0
    %287 = vmatpush1.msra.mxu0 %v238
    %288 = vmatprep.subr.mxu0 0.0
    %289 = vmatpush1.msra.mxu0 %v237
    %290 = vmatprep.subr.mxu0 0.0
    %291 = vmatpush1.msra.mxu0 %v236
    %292 = vmatprep.subr.mxu0 0.0
    %293 = vmatpush2.msra.mxu0 0.0
    %294 = vmatprep.subr.mxu0 0.0
    %295 = vmatpush2.msra.mxu0 0.0
    %296 = vmatprep.subr.mxu0 0.0
    %297 = vmatpush2.msra.mxu0 0.0
    %298 = vmatprep.subr.mxu0 0.0
    %299 = vmatpush2.msra.mxu0 0.0
    %300 = vmatprep.subr.mxu0 0.0
    %301 = vmatpush2.msra.mxu0 0.0
    %302 = vmatprep.subr.mxu0 0.0
    %303 = vmatpush2.msra.mxu0 0.0
    %304 = vmatprep.subr.mxu0 0.0
    %305 = vmatpush2.msra.mxu0 0.0
    %306 = vmatprep.subr.mxu0 0.0
    %307 = vmatpush2.msra.mxu0 0.0
    %308 = vmatprep.subr.mxu0 0.0
    %309 = vmatpush2.msra.mxu0 0.0
    %310 = vmatprep.subr.mxu0 0.0
    %311 = vmatpush2.msra.mxu0 0.0
    %312 = vmatprep.subr.mxu0 0.0
    %313 = vmatpush2.msra.mxu0 0.0
    %314 = vmatprep.subr.mxu0 0.0
    %315 = vmatpush2.msra.mxu0 0.0
    %316 = vmatprep.subr.mxu0 0.0
    %317 = vmatpush2.msra.mxu0 0.0
    %318 = vmatprep.subr.mxu0 0.0
    %319 = vmatpush2.msra.mxu0 0.0
    %320 = vmatprep.subr.mxu0 0.0
    %321 = vmatpush2.msra.mxu0 0.0
    %322 = vmatprep.subr.mxu0 0.0
    %323 = vmatpush2.msra.mxu0 0.0
    %324 = vmatprep.mubr.f32.mxu0 0.0
    %325 = vmatmul.mubr.f32.gmra.mxu0 %v234
    %v326 = vpop.f32.mrf.mxu0
    %v327 = vadd.f32 %v258, %v326
    %v328 = vpop.f32.mrf.mxu0
    %329 = vdwg.mxu0
    %v330 = vtanh.pop %v327
    %s331 = scalar_lea.vmem [#allocation4], 256
    %v332 = vld [vmem:[%s331] sm:$0xff]
    %v333 = vld [vmem:[%s331 + $0x8] sm:$0xff]
    %v334 = vld [vmem:[%s331 + $0x10] sm:$0xff]
    %v335 = vld [vmem:[%s331 + $0x18] sm:$0xff]
    %v336 = vld [vmem:[%s331 + $0x20] sm:$0xff]
    %v337 = vld [vmem:[%s331 + $0x28] sm:$0xff]
    %v338 = vld [vmem:[%s331 + $0x30] sm:$0xff]
    %v339 = vld [vmem:[%s331 + $0x38] sm:$0xff]
    %v340 = vld [vmem:[%s331 + $0x40] sm:$0xff]
    %v341 = vld [vmem:[%s331 + $0x48] sm:$0xff]
    %v342 = vld [vmem:[%s331 + $0x50] sm:$0xff]
    %v343 = vld [vmem:[%s331 + $0x58] sm:$0xff]
    %v344 = vld [vmem:[%s331 + $0x60] sm:$0xff]
    %v345 = vld [vmem:[%s331 + $0x68] sm:$0xff]
    %v346 = vld [vmem:[%s331 + $0x70] sm:$0xff]
    %v347 = vld [vmem:[%s331 + $0x78] sm:$0xff]
    %s348 = scalar_lea.vmem %s2, 3
    %v349 = vld [vmem:[%s348] sm:$0x1]
    %v351 = vlaneseq
    %v352 = vshrl.u32 %v351, 7
    %v353 = vsub.s32 0, %v352
    %v354 = vrot.slane %v349, %v353
    %356 = vmatprep.subr.mxu0 0.0
    %357 = vmatpush1.msra.mxu0 %v347
    %358 = vmatprep.subr.mxu0 0.0
    %359 = vmatpush1.msra.mxu0 %v346
    %360 = vmatprep.subr.mxu0 0.0
    %361 = vmatpush1.msra.mxu0 %v345
    %362 = vmatprep.subr.mxu0 0.0
    %363 = vmatpush1.msra.mxu0 %v344
    %364 = vmatprep.subr.mxu0 0.0
    %365 = vmatpush1.msra.mxu0 %v343
    %366 = vmatprep.subr.mxu0 0.0
    %367 = vmatpush1.msra.mxu0 %v342
    %368 = vmatprep.subr.mxu0 0.0
    %369 = vmatpush1.msra.mxu0 %v341
    %370 = vmatprep.subr.mxu0 0.0
    %371 = vmatpush1.msra.mxu0 %v340
    %372 = vmatprep.subr.mxu0 0.0
    %373 = vmatpush1.msra.mxu0 %v339
    %374 = vmatprep.subr.mxu0 0.0
    %375 = vmatpush1.msra.mxu0 %v338
    %376 = vmatprep.subr.mxu0 0.0
    %377 = vmatpush1.msra.mxu0 %v337
    %378 = vmatprep.subr.mxu0 0.0
    %379 = vmatpush1.msra.mxu0 %v336
    %380 = vmatprep.subr.mxu0 0.0
    %381 = vmatpush1.msra.mxu0 %v335
    %382 = vmatprep.subr.mxu0 0.0
    %383 = vmatpush1.msra.mxu0 %v334
    %384 = vmatprep.subr.mxu0 0.0
    %385 = vmatpush1.msra.mxu0 %v333
    %386 = vmatprep.subr.mxu0 0.0
    %387 = vmatpush1.msra.mxu0 %v332
    %388 = vmatprep.subr.mxu0 0.0
    %389 = vmatpush2.msra.mxu0 0.0
    %390 = vmatprep.subr.mxu0 0.0
    %391 = vmatpush2.msra.mxu0 0.0
    %392 = vmatprep.subr.mxu0 0.0
    %393 = vmatpush2.msra.mxu0 0.0
    %394 = vmatprep.subr.mxu0 0.0
    %395 = vmatpush2.msra.mxu0 0.0
    %396 = vmatprep.subr.mxu0 0.0
    %397 = vmatpush2.msra.mxu0 0.0
    %398 = vmatprep.subr.mxu0 0.0
    %399 = vmatpush2.msra.mxu0 0.0
    %400 = vmatprep.subr.mxu0 0.0
    %401 = vmatpush2.msra.mxu0 0.0
    %402 = vmatprep.subr.mxu0 0.0
    %403 = vmatpush2.msra.mxu0 0.0
    %404 = vmatprep.subr.mxu0 0.0
    %405 = vmatpush2.msra.mxu0 0.0
    %406 = vmatprep.subr.mxu0 0.0
    %407 = vmatpush2.msra.mxu0 0.0
    %408 = vmatprep.subr.mxu0 0.0
    %409 = vmatpush2.msra.mxu0 0.0
    %410 = vmatprep.subr.mxu0 0.0
    %411 = vmatpush2.msra.mxu0 0.0
    %412 = vmatprep.subr.mxu0 0.0
    %413 = vmatpush2.msra.mxu0 0.0
    %414 = vmatprep.subr.mxu0 0.0
    %415 = vmatpush2.msra.mxu0 0.0
    %416 = vmatprep.subr.mxu0 0.0
    %417 = vmatpush2.msra.mxu0 0.0
    %418 = vmatprep.subr.mxu0 0.0
    %419 = vmatpush2.msra.mxu0 0.0
    %420 = vmatprep.mubr.f32.mxu0 0.0
    %421 = vmatmul.mubr.f32.gmra.mxu0 %v330
    %v422 = vpop.f32.mrf.mxu0
    %v423 = vadd.f32 %v354, %v422
    %v424 = vpop.f32.mrf.mxu0
    %425 = vdwg.mxu0
    %v426 = vtanh.pop %v423
    %s427 = scalar_lea.vmem [#allocation4], 384
    %v428 = vld [vmem:[%s427] sm:$0xff]
    %v429 = vld [vmem:[%s427 + $0x8] sm:$0xff]
    %v430 = vld [vmem:[%s427 + $0x10] sm:$0xff]
    %v431 = vld [vmem:[%s427 + $0x18] sm:$0xff]
    %v432 = vld [vmem:[%s427 + $0x20] sm:$0xff]
    %v433 = vld [vmem:[%s427 + $0x28] sm:$0xff]
    %v434 = vld [vmem:[%s427 + $0x30] sm:$0xff]
    %v435 = vld [vmem:[%s427 + $0x38] sm:$0xff]
    %v436 = vld [vmem:[%s427 + $0x40] sm:$0xff]
    %v437 = vld [vmem:[%s427 + $0x48] sm:$0xff]
    %v438 = vld [vmem:[%s427 + $0x50] sm:$0xff]
    %v439 = vld [vmem:[%s427 + $0x58] sm:$0xff]
    %v440 = vld [vmem:[%s427 + $0x60] sm:$0xff]
    %v441 = vld [vmem:[%s427 + $0x68] sm:$0xff]
    %v442 = vld [vmem:[%s427 + $0x70] sm:$0xff]
    %v443 = vld [vmem:[%s427 + $0x78] sm:$0xff]
    %s444 = scalar_lea.vmem %s2, 4
    %v445 = vld [vmem:[%s444] sm:$0x1]
    %v447 = vlaneseq
    %v448 = vshrl.u32 %v447, 7
    %v449 = vsub.s32 0, %v448
    %v450 = vrot.slane %v445, %v449
    %452 = vmatprep.subr.mxu0 0.0
    %453 = vmatpush1.msra.mxu0 %v443
    %454 = vmatprep.subr.mxu0 0.0
    %455 = vmatpush1.msra.mxu0 %v442
    %456 = vmatprep.subr.mxu0 0.0
    %457 = vmatpush1.msra.mxu0 %v441
    %458 = vmatprep.subr.mxu0 0.0
    %459 = vmatpush1.msra.mxu0 %v440
    %460 = vmatprep.subr.mxu0 0.0
    %461 = vmatpush1.msra.mxu0 %v439
    %462 = vmatprep.subr.mxu0 0.0
    %463 = vmatpush1.msra.mxu0 %v438
    %464 = vmatprep.subr.mxu0 0.0
    %465 = vmatpush1.msra.mxu0 %v437
    %466 = vmatprep.subr.mxu0 0.0
    %467 = vmatpush1.msra.mxu0 %v436
    %468 = vmatprep.subr.mxu0 0.0
    %469 = vmatpush1.msra.mxu0 %v435
    %470 = vmatprep.subr.mxu0 0.0
    %471 = vmatpush1.msra.mxu0 %v434
    %472 = vmatprep.subr.mxu0 0.0
    %473 = vmatpush1.msra.mxu0 %v433
    %474 = vmatprep.subr.mxu0 0.0
    %475 = vmatpush1.msra.mxu0 %v432
    %476 = vmatprep.subr.mxu0 0.0
    %477 = vmatpush1.msra.mxu0 %v431
    %478 = vmatprep.subr.mxu0 0.0
    %479 = vmatpush1.msra.mxu0 %v430
    %480 = vmatprep.subr.mxu0 0.0
    %481 = vmatpush1.msra.mxu0 %v429
    %482 = vmatprep.subr.mxu0 0.0
    %483 = vmatpush1.msra.mxu0 %v428
    %484 = vmatprep.subr.mxu0 0.0
    %485 = vmatpush2.msra.mxu0 0.0
    %486 = vmatprep.subr.mxu0 0.0
    %487 = vmatpush2.msra.mxu0 0.0
    %488 = vmatprep.subr.mxu0 0.0
    %489 = vmatpush2.msra.mxu0 0.0
    %490 = vmatprep.subr.mxu0 0.0
    %491 = vmatpush2.msra.mxu0 0.0
    %492 = vmatprep.subr.mxu0 0.0
    %493 = vmatpush2.msra.mxu0 0.0
    %494 = vmatprep.subr.mxu0 0.0
    %495 = vmatpush2.msra.mxu0 0.0
    %496 = vmatprep.subr.mxu0 0.0
    %497 = vmatpush2.msra.mxu0 0.0
    %498 = vmatprep.subr.mxu0 0.0
    %499 = vmatpush2.msra.mxu0 0.0
    %500 = vmatprep.subr.mxu0 0.0
    %501 = vmatpush2.msra.mxu0 0.0
    %502 = vmatprep.subr.mxu0 0.0
    %503 = vmatpush2.msra.mxu0 0.0
    %504 = vmatprep.subr.mxu0 0.0
    %505 = vmatpush2.msra.mxu0 0.0
    %506 = vmatprep.subr.mxu0 0.0
    %507 = vmatpush2.msra.mxu0 0.0
    %508 = vmatprep.subr.mxu0 0.0
    %509 = vmatpush2.msra.mxu0 0.0
    %510 = vmatprep.subr.mxu0 0.0
    %511 = vmatpush2.msra.mxu0 0.0
    %512 = vmatprep.subr.mxu0 0.0
    %513 = vmatpush2.msra.mxu0 0.0
    %514 = vmatprep.subr.mxu0 0.0
    %515 = vmatpush2.msra.mxu0 0.0
    %516 = vmatprep.mubr.f32.mxu0 0.0
    %517 = vmatmul.mubr.f32.gmra.mxu0 %v426
    %v518 = vpop.f32.mrf.mxu0
    %v519 = vadd.f32 %v450, %v518
    %v520 = vpop.f32.mrf.mxu0
    %521 = vdwg.mxu0
    %v522 = vtanh.pop %v519
    %523 = vst [vmem:[%s4] sm:$0xff] %v522
    // Predicated region
    $region26: #{linear_conv_driver_forward.1} parent=1 // pred_check
      _
    $region27: #{linear_conv_driver_forward.1} parent=1 // pred_check_branch
      %525 = sbr.rel (0) target = $region29
    $region28: #{linear_conv_driver_forward.1} parent=1 // pred_region
      _
    $region29: #{linear_conv_driver_forward.1} parent=1 // pred_fallthru
      _
    // Predicated region
    $region30: #{linear_conv_driver_forward.1} parent=1 // pred_check
      _
    $region31: #{linear_conv_driver_forward.1} parent=1 // pred_check_branch
      %527 = sbr.rel (0) target = $region33
    $region32: #{linear_conv_driver_forward.1} parent=1 // pred_region
      _
    $region33: #{linear_conv_driver_forward.1} parent=1 // pred_fallthru
      _
    %528 = vsyncpa [#allocation3], 1
    %529 = vsyncpa [#allocation5], 1

</llo_original>
